<compile_context>
chip_gen: v7x
topology: tpu7x:2x2x1
jax: 0.10.0
libtpu: 0.0.40
codegen_flags: <defaults>
</compile_context>

<pallas_src>
import functools

import jax
import jax.numpy as jnp
from jax.experimental import pallas as pl
from jax.experimental.pallas import tpu as pltpu

_NLANE = 128   # lane-dense width of the fused head / packed output
_P = 8         # fused-column offset where class logits start
_BOX = 4       # number of box coordinates (fused columns [0, 4))
_LAB = 4       # packed lane holding the argmax label
_PRB = 5       # packed lane holding max softmax prob over non-background classes


def detr_trace_kernel(img_ref, par_ref, out_ref, *, B, Q, C, K):
    """Single-step kernel (no grid): the whole batch is processed at once.

    img_ref : (B*C, HW)        image, NCHW flattened to (B*C, H*W) (lane-dense)
    par_ref : (Q + C + 1, 128) [query embed (Q rows, lanes [0,C)) |
                                fused head weight rows (C rows)   |
                                fused bias row (1 row)]
               fused lane layout: [box(4) | pad(4) | class(K) | zeros..128]
    out_ref : (B*Q, 128)       packed [boxes(4) | label | proba | zeros..128]
    """
    HW = img_ref.shape[-1]
    inv_hw = 1.0 / HW
    BQ = B * Q

    e = par_ref[0:Q, :]                          # (Q, 128); only lanes [0, C) used
    bias_row = par_ref[Q + C:Q + C + 1, :]       # (1, 128) fused bias

    # 1-3) mean pool + query combine + fused box/class head.
    #      C is tiny (4), so the projection is unrolled broadcast-FMAs on the
    #      VPU instead of a degenerate MXU matmul; bias is folded in.
    per_batch = []
    for b in range(B):
        acc = bias_row                                               # (1, 128)
        for c in range(C):
            row = b * C + c
            # spatial mean of channel c of image b: dense lane reduction
            feat_bc = jnp.sum(img_ref[row:row + 1, :], axis=1,
                              keepdims=True) * inv_hw                # (1, 1)
            e_c = e[:, c:c + 1]                                      # (Q, 1)
            w_c = par_ref[Q + c:Q + c + 1, :]                        # (1, 128)
            acc = acc + (feat_bc * e_c) * w_c                        # (Q, 128)
        per_batch.append(acc)
    out = jnp.concatenate(per_batch, axis=0)                         # (B*Q, 128)

    # 4) labels = argmax(class logits, -1) with first-index tie-breaking.
    colF = jax.lax.broadcasted_iota(jnp.int32, (BQ, _NLANE), 1)
    is_cls = (colF >= _P) & (colF < _P + K)      # bounded mask (128-wide padding)
    NEG = jnp.float32(-1e30)
    masked = jnp.where(is_cls, out, NEG)
    mx = jnp.max(masked, axis=-1, keepdims=True)                     # (B*Q, 1)
    labels = jnp.min(jnp.where(masked == mx, colF, _NLANE),
                     axis=-1, keepdims=True) - _P                    # (B*Q, 1) int32

    # 5) probas = softmax(class logits)[:, :-1].max(-1).
    #    exp(NEG - mx) underflows to exactly 0, so non-class lanes drop out of
    #    both the sum and the max. Softmax is monotone, so max(p) = max(exp)/denom
    #    and the divide only touches a (B*Q, 1) column (exact, per review).
    expv = jnp.exp(masked - mx)                                      # (B*Q, 128)
    denom = jnp.sum(expv, axis=-1, keepdims=True)                    # (B*Q, 1)
    max_exp = jnp.max(jnp.where(colF == _P + K - 1, 0.0, expv),      # drop "no object"
                      axis=-1, keepdims=True)
    probas = max_exp / denom                                         # (B*Q, 1)

    # 6) boxes = sigmoid(box logits); pack into one lane-dense slab -> one
    #    unmasked full-width store.
    boxes = jax.nn.sigmoid(out)                                      # lanes [0,4) used
    packed = jnp.where(colF < _BOX, boxes,
             jnp.where(colF == _LAB, labels.astype(jnp.float32),
             jnp.where(colF == _PRB, probas, 0.0)))
    out_ref[...] = packed


@functools.partial(jax.jit, static_argnames=("num_queries",))
def trace_wrapper_forward(img_nchw, query_embed, w_cls, b_cls, w_box, b_box,
                          num_queries):
    """JAX wrapper: layout glue + one pallas_call. Returns (labels, boxes, probas)."""
    B, C, H, W = img_nchw.shape
    Q = num_queries
    K = w_cls.shape[-1]
    f32 = jnp.float32
    assert _P + K <= _NLANE, "class logits must fit in the 128-lane fused layout"

    # Lane-dense image slab: pure reshape of NCHW (no transpose).
    img = img_nchw.reshape(B * C, H * W).astype(f32)

    # Fused, 128-lane-wide head weight rows (bias folded as an extra row) and
    # zero-padded query embeddings, all in ONE VMEM input (fewer tiny DMAs).
    w_rows = jnp.zeros((C, _NLANE), f32)
    w_rows = w_rows.at[:, 0:_BOX].set(w_box.astype(f32))
    w_rows = w_rows.at[:, _P:_P + K].set(w_cls.astype(f32))
    b_row = jnp.zeros((1, _NLANE), f32)
    b_row = b_row.at[:, 0:_BOX].set(b_box.astype(f32))
    b_row = b_row.at[:, _P:_P + K].set(b_cls.astype(f32))
    e_pad = jnp.zeros((Q, _NLANE), f32).at[:, 0:C].set(query_embed.astype(f32))
    params = jnp.concatenate([e_pad, w_rows, b_row], axis=0)   # (Q + C + 1, 128)

    # Whole batch in one un-gridded step (a few KiB of VMEM). See header note
    # for the grid / vmem_limit_bytes plan at real DETR scale (esp. v7x).
    packed = pl.pallas_call(
        functools.partial(detr_trace_kernel, B=B, Q=Q, C=C, K=K),
        out_shape=jax.ShapeDtypeStruct((B * Q, _NLANE), jnp.float32),
        in_specs=[pl.BlockSpec(memory_space=pltpu.MemorySpace.VMEM),
                  pl.BlockSpec(memory_space=pltpu.MemorySpace.VMEM)],
        out_specs=pl.BlockSpec(memory_space=pltpu.MemorySpace.VMEM),
    )(img, params)

    # Unpack (plain-XLA glue). Rows are packed batch-major: row = b*Q + q.
    boxes = packed[:, 0:_BOX].reshape(B, Q, _BOX)
    labels = packed[:, _LAB].astype(jnp.int32).reshape(B, Q)
    probas = packed[0:Q, _PRB]                 # batch 0 only (matches torch spec)
    return labels, boxes, probas


def reference_forward(img_nchw, query_embed, w_cls, b_cls, w_box, b_box):
    """Pure-JAX reference of the synthetic model + TraceWrapper post-processing."""
    B, C, H, W = img_nchw.shape
    feat = jnp.mean(img_nchw.reshape(B, C, H * W), axis=-1)          # (B, C)
    h = feat[:, None, :] * query_embed[None, :, :]                   # (B, Q, C)
    pred_logits = jnp.einsum("bqc,ck->bqk", h, w_cls) + b_cls        # (B, Q, K)
    pred_boxes = jax.nn.sigmoid(jnp.einsum("bqc,ck->bqk", h, w_box) + b_box)
    labels = jnp.argmax(pred_logits, axis=2).astype(jnp.int32)
    probas = jnp.max(jax.nn.softmax(pred_logits, axis=-1)[0, :, :-1], axis=-1)
    return labels, pred_boxes, probas


if __name__ == "__main__":
    # Small shapes consistent with a DETR-like detector.
    B, C, H, W = 2, 4, 16, 16
    Q = 8            # num_queries
    K = 16           # num_classes + 1 ("no object" is the last class)

    key = jax.random.PRNGKey(0)
    k_img, k_e, k_wc, k_bc, k_wb, k_bb = jax.random.split(key, 6)

    img = jax.random.normal(k_img, (B, C, H, W), dtype=jnp.float32)
    query_embed = jax.random.normal(k_e, (Q, C), dtype=jnp.float32)
    w_cls = jax.random.normal(k_wc, (C, K), dtype=jnp.float32) * 0.5
    b_cls = jax.random.normal(k_bc, (1, K), dtype=jnp.float32) * 0.1
    w_box = jax.random.normal(k_wb, (C, 4), dtype=jnp.float32) * 0.5
    b_box = jax.random.normal(k_bb, (1, 4), dtype=jnp.float32) * 0.1

    labels, boxes, probas = trace_wrapper_forward(
        img, query_embed, w_cls, b_cls, w_box, b_box, num_queries=Q)
    jax.block_until_ready((labels, boxes, probas))

    # Cross-check against a pure-JAX reference.
    ref_labels, ref_boxes, ref_probas = reference_forward(
        img, query_embed, w_cls, b_cls, w_box, b_box)
    assert labels.shape == (B, Q) and boxes.shape == (B, Q, 4) and probas.shape == (Q,)
    assert jnp.all(labels == ref_labels)
    assert jnp.allclose(boxes, ref_boxes, atol=1e-4)
    # Exact softmax denominator now (no approx reciprocal), so a tight tolerance.
    assert jnp.allclose(probas, ref_probas, atol=1e-4)

    print("KERNEL_OK")
</pallas_src>

<mosaic_0001>
module attributes {stable_mosaic.version = 11 : i64} {
  func.func @detr_trace_kernel(%arg0: memref<8x256xf32, #tpu.memory_space<vmem>>, %arg1: memref<13x128xf32, #tpu.memory_space<vmem>>, %arg2: memref<16x128xf32, #tpu.memory_space<vmem>>) attributes {dimension_semantics = [], scalar_prefetch = 0 : i64, scratch_operands = 0 : i64, tpu.core_type = #tpu.core_type<tc>} {
    %c0 = arith.constant 0 : index
    %c0_0 = arith.constant 0 : index
    %0 = vector.load %arg1[%c0, %c0_0] : memref<13x128xf32, #tpu.memory_space<vmem>>, vector<8x128xf32>
    %c12 = arith.constant 12 : index
    %c0_1 = arith.constant 0 : index
    %1 = vector.load %arg1[%c12, %c0_1] : memref<13x128xf32, #tpu.memory_space<vmem>>, vector<1x128xf32>
    %c0_2 = arith.constant 0 : index
    %c0_3 = arith.constant 0 : index
    %2 = vector.load %arg0[%c0_2, %c0_3] : memref<8x256xf32, #tpu.memory_space<vmem>>, vector<1x256xf32>
    %cst = arith.constant dense<0.000000e+00> : vector<1xf32>
    %3 = vector.multi_reduction <add>, %2, %cst [1] : vector<1x256xf32> to vector<1xf32>
    %4 = vector.shape_cast %3 : vector<1xf32> to vector<1x1xf32>
    %cst_4 = arith.constant 3.906250e-03 : f32
    %5 = vector.broadcast %cst_4 : f32 to vector<1x1xf32>
    %6 = arith.mulf %4, %5 : vector<1x1xf32>
    %7 = vector.extract_strided_slice %0 {offsets = [0, 0], sizes = [8, 1], strides = [1, 1]} : vector<8x128xf32> to vector<8x1xf32>
    %c8 = arith.constant 8 : index
    %c0_5 = arith.constant 0 : index
    %8 = vector.load %arg1[%c8, %c0_5] : memref<13x128xf32, #tpu.memory_space<vmem>>, vector<1x128xf32>
    %9 = vector.broadcast %6 : vector<1x1xf32> to vector<8x1xf32>
    %10 = arith.mulf %9, %7 : vector<8x1xf32>
    %11 = vector.broadcast %10 : vector<8x1xf32> to vector<8x128xf32>
    %12 = vector.broadcast %8 : vector<1x128xf32> to vector<8x128xf32>
    %13 = arith.mulf %11, %12 : vector<8x128xf32>
    %14 = vector.broadcast %1 : vector<1x128xf32> to vector<8x128xf32>
    %15 = arith.addf %14, %13 : vector<8x128xf32>
    %c1 = arith.constant 1 : index
    %c0_6 = arith.constant 0 : index
    %16 = vector.load %arg0[%c1, %c0_6] : memref<8x256xf32, #tpu.memory_space<vmem>>, vector<1x256xf32>
    %cst_7 = arith.constant dense<0.000000e+00> : vector<1xf32>
    %17 = vector.multi_reduction <add>, %16, %cst_7 [1] : vector<1x256xf32> to vector<1xf32>
    %18 = vector.shape_cast %17 : vector<1xf32> to vector<1x1xf32>
    %cst_8 = arith.constant 3.906250e-03 : f32
    %19 = vector.broadcast %cst_8 : f32 to vector<1x1xf32>
    %20 = arith.mulf %18, %19 : vector<1x1xf32>
    %21 = vector.extract_strided_slice %0 {offsets = [0, 1], sizes = [8, 1], strides = [1, 1]} : vector<8x128xf32> to vector<8x1xf32>
    %c9 = arith.constant 9 : index
    %c0_9 = arith.constant 0 : index
    %22 = vector.load %arg1[%c9, %c0_9] : memref<13x128xf32, #tpu.memory_space<vmem>>, vector<1x128xf32>
    %23 = vector.broadcast %20 : vector<1x1xf32> to vector<8x1xf32>
    %24 = arith.mulf %23, %21 : vector<8x1xf32>
    %25 = vector.broadcast %24 : vector<8x1xf32> to vector<8x128xf32>
    %26 = vector.broadcast %22 : vector<1x128xf32> to vector<8x128xf32>
    %27 = arith.mulf %25, %26 : vector<8x128xf32>
    %28 = arith.addf %15, %27 : vector<8x128xf32>
    %c2 = arith.constant 2 : index
    %c0_10 = arith.constant 0 : index
    %29 = vector.load %arg0[%c2, %c0_10] : memref<8x256xf32, #tpu.memory_space<vmem>>, vector<1x256xf32>
    %cst_11 = arith.constant dense<0.000000e+00> : vector<1xf32>
    %30 = vector.multi_reduction <add>, %29, %cst_11 [1] : vector<1x256xf32> to vector<1xf32>
    %31 = vector.shape_cast %30 : vector<1xf32> to vector<1x1xf32>
    %cst_12 = arith.constant 3.906250e-03 : f32
    %32 = vector.broadcast %cst_12 : f32 to vector<1x1xf32>
    %33 = arith.mulf %31, %32 : vector<1x1xf32>
    %34 = vector.extract_strided_slice %0 {offsets = [0, 2], sizes = [8, 1], strides = [1, 1]} : vector<8x128xf32> to vector<8x1xf32>
    %c10 = arith.constant 10 : index
    %c0_13 = arith.constant 0 : index
    %35 = vector.load %arg1[%c10, %c0_13] : memref<13x128xf32, #tpu.memory_space<vmem>>, vector<1x128xf32>
    %36 = vector.broadcast %33 : vector<1x1xf32> to vector<8x1xf32>
    %37 = arith.mulf %36, %34 : vector<8x1xf32>
    %38 = vector.broadcast %37 : vector<8x1xf32> to vector<8x128xf32>
    %39 = vector.broadcast %35 : vector<1x128xf32> to vector<8x128xf32>
    %40 = arith.mulf %38, %39 : vector<8x128xf32>
    %41 = arith.addf %28, %40 : vector<8x128xf32>
    %c3 = arith.constant 3 : index
    %c0_14 = arith.constant 0 : index
    %42 = vector.load %arg0[%c3, %c0_14] : memref<8x256xf32, #tpu.memory_space<vmem>>, vector<1x256xf32>
    %cst_15 = arith.constant dense<0.000000e+00> : vector<1xf32>
    %43 = vector.multi_reduction <add>, %42, %cst_15 [1] : vector<1x256xf32> to vector<1xf32>
    %44 = vector.shape_cast %43 : vector<1xf32> to vector<1x1xf32>
    %cst_16 = arith.constant 3.906250e-03 : f32
    %45 = vector.broadcast %cst_16 : f32 to vector<1x1xf32>
    %46 = arith.mulf %44, %45 : vector<1x1xf32>
    %47 = vector.extract_strided_slice %0 {offsets = [0, 3], sizes = [8, 1], strides = [1, 1]} : vector<8x128xf32> to vector<8x1xf32>
    %c11 = arith.constant 11 : index
    %c0_17 = arith.constant 0 : index
    %48 = vector.load %arg1[%c11, %c0_17] : memref<13x128xf32, #tpu.memory_space<vmem>>, vector<1x128xf32>
    %49 = vector.broadcast %46 : vector<1x1xf32> to vector<8x1xf32>
    %50 = arith.mulf %49, %47 : vector<8x1xf32>
    %51 = vector.broadcast %50 : vector<8x1xf32> to vector<8x128xf32>
    %52 = vector.broadcast %48 : vector<1x128xf32> to vector<8x128xf32>
    %53 = arith.mulf %51, %52 : vector<8x128xf32>
    %54 = arith.addf %41, %53 : vector<8x128xf32>
    %c4 = arith.constant 4 : index
    %c0_18 = arith.constant 0 : index
    %55 = vector.load %arg0[%c4, %c0_18] : memref<8x256xf32, #tpu.memory_space<vmem>>, vector<1x256xf32>
    %cst_19 = arith.constant dense<0.000000e+00> : vector<1xf32>
    %56 = vector.multi_reduction <add>, %55, %cst_19 [1] : vector<1x256xf32> to vector<1xf32>
    %57 = vector.shape_cast %56 : vector<1xf32> to vector<1x1xf32>
    %cst_20 = arith.constant 3.906250e-03 : f32
    %58 = vector.broadcast %cst_20 : f32 to vector<1x1xf32>
    %59 = arith.mulf %57, %58 : vector<1x1xf32>
    %60 = vector.extract_strided_slice %0 {offsets = [0, 0], sizes = [8, 1], strides = [1, 1]} : vector<8x128xf32> to vector<8x1xf32>
    %c8_21 = arith.constant 8 : index
    %c0_22 = arith.constant 0 : index
    %61 = vector.load %arg1[%c8_21, %c0_22] : memref<13x128xf32, #tpu.memory_space<vmem>>, vector<1x128xf32>
    %62 = vector.broadcast %59 : vector<1x1xf32> to vector<8x1xf32>
    %63 = arith.mulf %62, %60 : vector<8x1xf32>
    %64 = vector.broadcast %63 : vector<8x1xf32> to vector<8x128xf32>
    %65 = vector.broadcast %61 : vector<1x128xf32> to vector<8x128xf32>
    %66 = arith.mulf %64, %65 : vector<8x128xf32>
    %67 = vector.broadcast %1 : vector<1x128xf32> to vector<8x128xf32>
    %68 = arith.addf %67, %66 : vector<8x128xf32>
    %c5 = arith.constant 5 : index
    %c0_23 = arith.constant 0 : index
    %69 = vector.load %arg0[%c5, %c0_23] : memref<8x256xf32, #tpu.memory_space<vmem>>, vector<1x256xf32>
    %cst_24 = arith.constant dense<0.000000e+00> : vector<1xf32>
    %70 = vector.multi_reduction <add>, %69, %cst_24 [1] : vector<1x256xf32> to vector<1xf32>
    %71 = vector.shape_cast %70 : vector<1xf32> to vector<1x1xf32>
    %cst_25 = arith.constant 3.906250e-03 : f32
    %72 = vector.broadcast %cst_25 : f32 to vector<1x1xf32>
    %73 = arith.mulf %71, %72 : vector<1x1xf32>
    %74 = vector.extract_strided_slice %0 {offsets = [0, 1], sizes = [8, 1], strides = [1, 1]} : vector<8x128xf32> to vector<8x1xf32>
    %c9_26 = arith.constant 9 : index
    %c0_27 = arith.constant 0 : index
    %75 = vector.load %arg1[%c9_26, %c0_27] : memref<13x128xf32, #tpu.memory_space<vmem>>, vector<1x128xf32>
    %76 = vector.broadcast %73 : vector<1x1xf32> to vector<8x1xf32>
    %77 = arith.mulf %76, %74 : vector<8x1xf32>
    %78 = vector.broadcast %77 : vector<8x1xf32> to vector<8x128xf32>
    %79 = vector.broadcast %75 : vector<1x128xf32> to vector<8x128xf32>
    %80 = arith.mulf %78, %79 : vector<8x128xf32>
    %81 = arith.addf %68, %80 : vector<8x128xf32>
    %c6 = arith.constant 6 : index
    %c0_28 = arith.constant 0 : index
    %82 = vector.load %arg0[%c6, %c0_28] : memref<8x256xf32, #tpu.memory_space<vmem>>, vector<1x256xf32>
    %cst_29 = arith.constant dense<0.000000e+00> : vector<1xf32>
    %83 = vector.multi_reduction <add>, %82, %cst_29 [1] : vector<1x256xf32> to vector<1xf32>
    %84 = vector.shape_cast %83 : vector<1xf32> to vector<1x1xf32>
    %cst_30 = arith.constant 3.906250e-03 : f32
    %85 = vector.broadcast %cst_30 : f32 to vector<1x1xf32>
    %86 = arith.mulf %84, %85 : vector<1x1xf32>
    %87 = vector.extract_strided_slice %0 {offsets = [0, 2], sizes = [8, 1], strides = [1, 1]} : vector<8x128xf32> to vector<8x1xf32>
    %c10_31 = arith.constant 10 : index
    %c0_32 = arith.constant 0 : index
    %88 = vector.load %arg1[%c10_31, %c0_32] : memref<13x128xf32, #tpu.memory_space<vmem>>, vector<1x128xf32>
    %89 = vector.broadcast %86 : vector<1x1xf32> to vector<8x1xf32>
    %90 = arith.mulf %89, %87 : vector<8x1xf32>
    %91 = vector.broadcast %90 : vector<8x1xf32> to vector<8x128xf32>
    %92 = vector.broadcast %88 : vector<1x128xf32> to vector<8x128xf32>
    %93 = arith.mulf %91, %92 : vector<8x128xf32>
    %94 = arith.addf %81, %93 : vector<8x128xf32>
    %c7 = arith.constant 7 : index
    %c0_33 = arith.constant 0 : index
    %95 = vector.load %arg0[%c7, %c0_33] : memref<8x256xf32, #tpu.memory_space<vmem>>, vector<1x256xf32>
    %cst_34 = arith.constant dense<0.000000e+00> : vector<1xf32>
    %96 = vector.multi_reduction <add>, %95, %cst_34 [1] : vector<1x256xf32> to vector<1xf32>
    %97 = vector.shape_cast %96 : vector<1xf32> to vector<1x1xf32>
    %cst_35 = arith.constant 3.906250e-03 : f32
    %98 = vector.broadcast %cst_35 : f32 to vector<1x1xf32>
    %99 = arith.mulf %97, %98 : vector<1x1xf32>
    %100 = vector.extract_strided_slice %0 {offsets = [0, 3], sizes = [8, 1], strides = [1, 1]} : vector<8x128xf32> to vector<8x1xf32>
    %c11_36 = arith.constant 11 : index
    %c0_37 = arith.constant 0 : index
    %101 = vector.load %arg1[%c11_36, %c0_37] : memref<13x128xf32, #tpu.memory_space<vmem>>, vector<1x128xf32>
    %102 = vector.broadcast %99 : vector<1x1xf32> to vector<8x1xf32>
    %103 = arith.mulf %102, %100 : vector<8x1xf32>
    %104 = vector.broadcast %103 : vector<8x1xf32> to vector<8x128xf32>
    %105 = vector.broadcast %101 : vector<1x128xf32> to vector<8x128xf32>
    %106 = arith.mulf %104, %105 : vector<8x128xf32>
    %107 = arith.addf %94, %106 : vector<8x128xf32>
    %108 = tpu.concatenate %54, %107 in 0 : vector<8x128xf32>, vector<8x128xf32> -> vector<16x128xf32>
    %109 = tpu.iota {dimensions = array<i32: 1>} : vector<16x128xi32>
    %c8_i32 = arith.constant 8 : i32
    %110 = vector.broadcast %c8_i32 : i32 to vector<16x128xi32>
    %111 = arith.cmpi sge, %109, %110 : vector<16x128xi32>
    %c24_i32 = arith.constant 24 : i32
    %112 = vector.broadcast %c24_i32 : i32 to vector<16x128xi32>
    %113 = arith.cmpi slt, %109, %112 : vector<16x128xi32>
    %114 = arith.andi %111, %113 : vector<16x128xi1>
    %cst_38 = arith.constant -1.000000e+30 : f32
    %115 = vector.broadcast %cst_38 : f32 to vector<16x128xf32>
    %116 = arith.select %114, %108, %115 : vector<16x128xi1>, vector<16x128xf32>
    %cst_39 = arith.constant dense<0xFF800000> : vector<16xf32>
    %117 = vector.multi_reduction <maximumf>, %116, %cst_39 [1] : vector<16x128xf32> to vector<16xf32>
    %118 = vector.shape_cast %117 : vector<16xf32> to vector<16x1xf32>
    %119 = vector.broadcast %118 : vector<16x1xf32> to vector<16x128xf32>
    %120 = arith.cmpf oeq, %116, %119 : vector<16x128xf32>
    %c128_i32 = arith.constant 128 : i32
    %121 = vector.broadcast %c128_i32 : i32 to vector<16x128xi32>
    %122 = arith.select %120, %109, %121 : vector<16x128xi1>, vector<16x128xi32>
    %cst_40 = arith.constant dense<2147483647> : vector<16xi32>
    %123 = vector.multi_reduction <minsi>, %122, %cst_40 [1] : vector<16x128xi32> to vector<16xi32>
    %124 = vector.shape_cast %123 : vector<16xi32> to vector<16x1xi32>
    %c8_i32_41 = arith.constant 8 : i32
    %125 = vector.broadcast %c8_i32_41 : i32 to vector<16x1xi32>
    %126 = arith.subi %124, %125 : vector<16x1xi32>
    %127 = vector.broadcast %118 : vector<16x1xf32> to vector<16x128xf32>
    %128 = arith.subf %116, %127 : vector<16x128xf32>
    %129 = math.exp %128 : vector<16x128xf32>
    %cst_42 = arith.constant dense<0.000000e+00> : vector<16xf32>
    %130 = vector.multi_reduction <add>, %129, %cst_42 [1] : vector<16x128xf32> to vector<16xf32>
    %131 = vector.shape_cast %130 : vector<16xf32> to vector<16x1xf32>
    %c23_i32 = arith.constant 23 : i32
    %132 = vector.broadcast %c23_i32 : i32 to vector<16x128xi32>
    %133 = arith.cmpi eq, %109, %132 : vector<16x128xi32>
    %cst_43 = arith.constant 0.000000e+00 : f32
    %134 = vector.broadcast %cst_43 : f32 to vector<16x128xf32>
    %135 = arith.select %133, %134, %129 : vector<16x128xi1>, vector<16x128xf32>
    %cst_44 = arith.constant dense<0xFF800000> : vector<16xf32>
    %136 = vector.multi_reduction <maximumf>, %135, %cst_44 [1] : vector<16x128xf32> to vector<16xf32>
    %137 = vector.shape_cast %136 : vector<16xf32> to vector<16x1xf32>
    %138 = arith.divf %137, %131 : vector<16x1xf32>
    %139 = arith.negf %108 : vector<16x128xf32>
    %140 = math.exp %139 : vector<16x128xf32>
    %cst_45 = arith.constant 1.000000e+00 : f32
    %141 = vector.broadcast %cst_45 : f32 to vector<16x128xf32>
    %142 = arith.addf %141, %140 : vector<16x128xf32>
    %143 = arith.divf %141, %142 : vector<16x128xf32>
    %c4_i32 = arith.constant 4 : i32
    %144 = vector.broadcast %c4_i32 : i32 to vector<16x128xi32>
    %145 = arith.cmpi slt, %109, %144 : vector<16x128xi32>
    %c4_i32_46 = arith.constant 4 : i32
    %146 = vector.broadcast %c4_i32_46 : i32 to vector<16x128xi32>
    %147 = arith.cmpi eq, %109, %146 : vector<16x128xi32>
    %148 = arith.sitofp %126 : vector<16x1xi32> to vector<16x1xf32>
    %c5_i32 = arith.constant 5 : i32
    %149 = vector.broadcast %c5_i32 : i32 to vector<16x128xi32>
    %150 = arith.cmpi eq, %109, %149 : vector<16x128xi32>
    %cst_47 = arith.constant 0.000000e+00 : f32
    %151 = vector.shape_cast %138 : vector<16x1xf32> to vector<16x1xf32>
    %152 = vector.broadcast %151 : vector<16x1xf32> to vector<16x128xf32>
    %153 = vector.broadcast %cst_47 : f32 to vector<16x128xf32>
    %154 = arith.select %150, %152, %153 : vector<16x128xi1>, vector<16x128xf32>
    %155 = vector.shape_cast %148 : vector<16x1xf32> to vector<16x1xf32>
    %156 = vector.broadcast %155 : vector<16x1xf32> to vector<16x128xf32>
    %157 = arith.select %147, %156, %154 : vector<16x128xi1>, vector<16x128xf32>
    %158 = arith.select %145, %143, %157 : vector<16x128xi1>, vector<16x128xf32>
    %c0_48 = arith.constant 0 : index
    %c0_49 = arith.constant 0 : index
    %159 = vector.load %arg2[%c0_48, %c0_49] : memref<16x128xf32, #tpu.memory_space<vmem>>, vector<16x128xf32>
    tpu.vector_store %arg2[%c0_48, %c0_49], %158 {strides = array<i32>} : memref<16x128xf32, #tpu.memory_space<vmem>>, vector<16x128xf32>,
    return
  }
}

</mosaic_0001>

<llo_original>
// kernel: trace_wrapper_forward.1
$region0: #{trace_wrapper_forward.1}
  #allocation0 [shape = 'u32[]', space=smem, size = 0x4, offset = 0x4, fixed_abs, tag = 'smem constant byte address 0x4 - core index']
  #allocation1 [shape = 'u32[144,128]{1,0:T(1,128)}', space=vmem, size = 0x12000, scoped, tag = 'internal scratch']
  %s0 = inlined_call_operand.vmem [shape: f32[8,256], index: 0, kind: input, shape index: {}]
  %s1 = inlined_call_operand.vmem [shape: f32[13,128], index: 1, kind: input, shape index: {}]
  %s2 = inlined_call_operand.vmem [shape: f32[16,128], index: 2, kind: output, shape index: {}]
  %s3 = sld [smem:[#allocation0]]
  $region18: #{trace_wrapper_forward.1} parent=0
    _
  %s5 = ssub.s32 1, %s3
  %s6 = scalar_select 0, %s5, %s3
  // Predicated region
  $region2: #{trace_wrapper_forward.1} parent=0 // pred_check
    _
  $region3: #{trace_wrapper_forward.1} parent=0 // pred_check_branch
    %8 = sbr.rel (0) target = $region5
  $region4: #{trace_wrapper_forward.1} parent=0 // pred_region
    _
  $region5: #{trace_wrapper_forward.1} parent=0 // pred_fallthru
    _
  // Predicated region
  $region6: #{trace_wrapper_forward.1} parent=0 // pred_check
    _
  $region7: #{trace_wrapper_forward.1} parent=0 // pred_check_branch
    %10 = sbr.rel (0) target = $region9
  $region8: #{trace_wrapper_forward.1} parent=0 // pred_region
    _
  $region9: #{trace_wrapper_forward.1} parent=0 // pred_fallthru
    _
  %v11 = vld [vmem:[%s1] sm:$0xff]
  %v12 = vld [vmem:[%s1 + $0xc] sm:$0x1]
  %v13 = vld [vmem:[%s0] ss:$8 sm:$0x3]
  %v15 = vlaneseq
  %v16 = vshrl.u32 %v15, 7
  %v17 = vsub.s32 0, %v16
  %v18 = vrot.slane %v13, %v17
  %v19 = vlaneseq
  %v20 = vshrl.u32 %v19, 7
  %v21 = vsub.s32 1, %v20
  %v22 = vrot.slane %v13, %v21
  %vm25 = vcmask 1040384
  %v26 = vsel %vm25, %v18, 0.0
  %v27 = vsel %vm25, %v22, 0.0
  %v28 = vadd.f32 %v26, %v27
  %29 = vadd.xlane.f32.xlu0 %v28
  %v30 = vpop.xlane.xlu0 %29
  %v31 = vmul.f32 %v30, 0.00390625
  %v32 = vld [vmem:[%s1 + $0x8] sm:$0x1]
  %v33 = vlaneseq
  %v34 = vshrl.u32 %v33, 7
  %v35 = vsub.s32 0, %v34
  %v36 = vrot.slane %v31, %v35
  %v37 = vmul.f32 %v36, %v11
  %39 = vset.pattern.permute.xlu0 0
  %40 = vperm.xlu0 %39, %v37
  %v41 = vpop.permute.xlu0 %40
  %v43 = vlaneseq
  %v44 = vshrl.u32 %v43, 7
  %v45 = vsub.s32 0, %v44
  %v46 = vrot.slane %v32, %v45
  %v47 = vmul.f32 %v41, %v46
  %v48 = vlaneseq
  %v49 = vshrl.u32 %v48, 7
  %v50 = vsub.s32 0, %v49
  %v51 = vrot.slane %v12, %v50
  %v52 = vadd.f32 %v51, %v47
  %s53 = scalar_lea.vmem %s0, 1
  %v54 = vld [vmem:[%s53] ss:$8 sm:$0x3]
  %v56 = vlaneseq
  %v57 = vshrl.u32 %v56, 7
  %v58 = vsub.s32 0, %v57
  %v59 = vrot.slane %v54, %v58
  %v60 = vlaneseq
  %v61 = vshrl.u32 %v60, 7
  %v62 = vsub.s32 1, %v61
  %v63 = vrot.slane %v54, %v62
  %v66 = vsel %vm25, %v59, 0.0
  %v67 = vsel %vm25, %v63, 0.0
  %v68 = vadd.f32 %v66, %v67
  %69 = vadd.xlane.f32.xlu0 %v68
  %v70 = vpop.xlane.xlu0 %69
  %v71 = vmul.f32 %v70, 0.00390625
  %v72 = vld [vmem:[%s1 + $0x9] sm:$0x1]
  %v73 = vlaneseq
  %v74 = vshrl.u32 %v73, 7
  %v75 = vsub.s32 0, %v74
  %v76 = vrot.slane %v71, %v75
  %v77 = vmul.f32 %v76, %v11
  %79 = vset.pattern.permute.xlu0 1
  %80 = vperm.xlu0 %79, %v77
  %v81 = vpop.permute.xlu0 %80
  %v83 = vlaneseq
  %v84 = vshrl.u32 %v83, 7
  %v85 = vsub.s32 0, %v84
  %v86 = vrot.slane %v72, %v85
  %v87 = vmul.f32 %v81, %v86
  %v88 = vadd.f32 %v52, %v87
  %s89 = scalar_lea.vmem %s0, 2
  %v90 = vld [vmem:[%s89] ss:$8 sm:$0x3]
  %v92 = vlaneseq
  %v93 = vshrl.u32 %v92, 7
  %v94 = vsub.s32 0, %v93
  %v95 = vrot.slane %v90, %v94
  %v96 = vlaneseq
  %v97 = vshrl.u32 %v96, 7
  %v98 = vsub.s32 1, %v97
  %v99 = vrot.slane %v90, %v98
  %v102 = vsel %vm25, %v95, 0.0
  %v103 = vsel %vm25, %v99, 0.0
  %v104 = vadd.f32 %v102, %v103
  %105 = vadd.xlane.f32.xlu0 %v104
  %v106 = vpop.xlane.xlu0 %105
  %v107 = vmul.f32 %v106, 0.00390625
  %v108 = vld [vmem:[%s1 + $0xa] sm:$0x1]
  %v109 = vlaneseq
  %v110 = vshrl.u32 %v109, 7
  %v111 = vsub.s32 0, %v110
  %v112 = vrot.slane %v107, %v111
  %v113 = vmul.f32 %v112, %v11
  %115 = vset.pattern.permute.xlu0 2
  %116 = vperm.xlu0 %115, %v113
  %v117 = vpop.permute.xlu0 %116
  %v119 = vlaneseq
  %v120 = vshrl.u32 %v119, 7
  %v121 = vsub.s32 0, %v120
  %v122 = vrot.slane %v108, %v121
  %v123 = vmul.f32 %v117, %v122
  %v124 = vadd.f32 %v88, %v123
  %s125 = scalar_lea.vmem %s0, 3
  %v126 = vld [vmem:[%s125] ss:$8 sm:$0x3]
  %v128 = vlaneseq
  %v129 = vshrl.u32 %v128, 7
  %v130 = vsub.s32 0, %v129
  %v131 = vrot.slane %v126, %v130
  %v132 = vlaneseq
  %v133 = vshrl.u32 %v132, 7
  %v134 = vsub.s32 1, %v133
  %v135 = vrot.slane %v126, %v134
  %v138 = vsel %vm25, %v131, 0.0
  %v139 = vsel %vm25, %v135, 0.0
  %v140 = vadd.f32 %v138, %v139
  %141 = vadd.xlane.f32.xlu0 %v140
  %v142 = vpop.xlane.xlu0 %141
  %v143 = vmul.f32 %v142, 0.00390625
  %v144 = vld [vmem:[%s1 + $0xb] sm:$0x1]
  %v145 = vlaneseq
  %v146 = vshrl.u32 %v145, 7
  %v147 = vsub.s32 0, %v146
  %v148 = vrot.slane %v143, %v147
  %v149 = vmul.f32 %v148, %v11
  %151 = vset.pattern.permute.xlu0 3
  %152 = vperm.xlu0 %151, %v149
  %v153 = vpop.permute.xlu0 %152
  %v155 = vlaneseq
  %v156 = vshrl.u32 %v155, 7
  %v157 = vsub.s32 0, %v156
  %v158 = vrot.slane %v144, %v157
  %v159 = vmul.f32 %v153, %v158
  %v160 = vadd.f32 %v124, %v159
  %s161 = scalar_lea.vmem %s0, 4
  %v162 = vld [vmem:[%s161] ss:$8 sm:$0x3]
  %v164 = vlaneseq
  %v165 = vshrl.u32 %v164, 7
  %v166 = vsub.s32 0, %v165
  %v167 = vrot.slane %v162, %v166
  %v168 = vlaneseq
  %v169 = vshrl.u32 %v168, 7
  %v170 = vsub.s32 1, %v169
  %v171 = vrot.slane %v162, %v170
  %v174 = vsel %vm25, %v167, 0.0
  %v175 = vsel %vm25, %v171, 0.0
  %v176 = vadd.f32 %v174, %v175
  %177 = vadd.xlane.f32.xlu0 %v176
  %v178 = vpop.xlane.xlu0 %177
  %v179 = vmul.f32 %v178, 0.00390625
  %v180 = vlaneseq
  %v181 = vshrl.u32 %v180, 7
  %v182 = vsub.s32 0, %v181
  %v183 = vrot.slane %v179, %v182
  %v184 = vmul.f32 %v183, %v11
  %186 = vset.pattern.permute.xlu0 0
  %187 = vperm.xlu0 %186, %v184
  %v188 = vpop.permute.xlu0 %187
  %v190 = vmul.f32 %v188, %v46
  %v191 = vadd.f32 %v51, %v190
  %s192 = scalar_lea.vmem %s0, 5
  %v193 = vld [vmem:[%s192] ss:$8 sm:$0x3]
  %v195 = vlaneseq
  %v196 = vshrl.u32 %v195, 7
  %v197 = vsub.s32 0, %v196
  %v198 = vrot.slane %v193, %v197
  %v199 = vlaneseq
  %v200 = vshrl.u32 %v199, 7
  %v201 = vsub.s32 1, %v200
  %v202 = vrot.slane %v193, %v201
  %v205 = vsel %vm25, %v198, 0.0
  %v206 = vsel %vm25, %v202, 0.0
  %v207 = vadd.f32 %v205, %v206
  %208 = vadd.xlane.f32.xlu0 %v207
  %v209 = vpop.xlane.xlu0 %208
  %v210 = vmul.f32 %v209, 0.00390625
  %v211 = vlaneseq
  %v212 = vshrl.u32 %v211, 7
  %v213 = vsub.s32 0, %v212
  %v214 = vrot.slane %v210, %v213
  %v215 = vmul.f32 %v214, %v11
  %217 = vset.pattern.permute.xlu0 1
  %218 = vperm.xlu0 %217, %v215
  %v219 = vpop.permute.xlu0 %218
  %v221 = vmul.f32 %v219, %v86
  %v222 = vadd.f32 %v191, %v221
  %s223 = scalar_lea.vmem %s0, 6
  %v224 = vld [vmem:[%s223] ss:$8 sm:$0x3]
  %v226 = vlaneseq
  %v227 = vshrl.u32 %v226, 7
  %v228 = vsub.s32 0, %v227
  %v229 = vrot.slane %v224, %v228
  %v230 = vlaneseq
  %v231 = vshrl.u32 %v230, 7
  %v232 = vsub.s32 1, %v231
  %v233 = vrot.slane %v224, %v232
  %v236 = vsel %vm25, %v229, 0.0
  %v237 = vsel %vm25, %v233, 0.0
  %v238 = vadd.f32 %v236, %v237
  %239 = vadd.xlane.f32.xlu0 %v238
  %v240 = vpop.xlane.xlu0 %239
  %v241 = vmul.f32 %v240, 0.00390625
  %v242 = vlaneseq
  %v243 = vshrl.u32 %v242, 7
  %v244 = vsub.s32 0, %v243
  %v245 = vrot.slane %v241, %v244
  %v246 = vmul.f32 %v245, %v11
  %248 = vset.pattern.permute.xlu0 2
  %249 = vperm.xlu0 %248, %v246
  %v250 = vpop.permute.xlu0 %249
  %v252 = vmul.f32 %v250, %v122
  %v253 = vadd.f32 %v222, %v252
  %s254 = scalar_lea.vmem %s0, 7
  %v255 = vld [vmem:[%s254] ss:$8 sm:$0x3]
  %v257 = vlaneseq
  %v258 = vshrl.u32 %v257, 7
  %v259 = vsub.s32 0, %v258
  %v260 = vrot.slane %v255, %v259
  %v261 = vlaneseq
  %v262 = vshrl.u32 %v261, 7
  %v263 = vsub.s32 1, %v262
  %v264 = vrot.slane %v255, %v263
  %v267 = vsel %vm25, %v260, 0.0
  %v268 = vsel %vm25, %v264, 0.0
  %v269 = vadd.f32 %v267, %v268
  %270 = vadd.xlane.f32.xlu0 %v269
  %v271 = vpop.xlane.xlu0 %270
  %v272 = vmul.f32 %v271, 0.00390625
  %v273 = vlaneseq
  %v274 = vshrl.u32 %v273, 7
  %v275 = vsub.s32 0, %v274
  %v276 = vrot.slane %v272, %v275
  %v277 = vmul.f32 %v276, %v11
  %279 = vset.pattern.permute.xlu0 3
  %280 = vperm.xlu0 %279, %v277
  %v281 = vpop.permute.xlu0 %280
  %v283 = vmul.f32 %v281, %v158
  %v284 = vadd.f32 %v253, %v283
  %v285 = vlaneseq
  %v286 = vand.u32 %v285, 127
  %vm287 = vcmp.ge.s32.totalorder %v286, 8
  %vm288 = vcmp.lt.s32.totalorder %v286, 24
  %vm289 = vmand %vm287, %vm288
  %v290 = vsel %vm289, %v160, -1e+30
  %v291 = vsel %vm289, %v284, -1e+30
  %292 = vmax.xlane.f32.xlu0 %v290
  %v293 = vpop.xlane.xlu0 %292
  %294 = vmax.xlane.f32.xlu0 %v291
  %v295 = vpop.xlane.xlu0 %294
  %vm296 = vcmp.eq.f32.partialorder %v290, %v293
  %vm297 = vcmp.eq.f32.partialorder %v291, %v295
  %v298 = vsel %vm296, %v286, 128
  %v299 = vsel %vm297, %v286, 128
  %v300 = vand.u32 %v298, 65535
  %v301 = vshra.s32 %v298, 16
  %v302 = vcvt.s32.f32 %v300
  %v303 = vcvt.s32.f32 %v301
  %304 = vmin.xlane.f32.xlu0 %v303
  %v305 = vpop.xlane.xlu0 %304
  %vm306 = vcmp.eq.f32.partialorder %v303, %v305
  %v307 = vsel %vm306, %v302, inf
  %308 = vmin.xlane.f32.xlu0 %v307
  %v309 = vpop.xlane.xlu0 %308
  %v310 = vcvt.f32.s32 %v309
  %v311 = vcvt.f32.s32 %v305
  %v312 = vshll.u32 %v311, 16
  %v313 = vadd.s32 %v312, %v310
  %v314 = vand.u32 %v299, 65535
  %v315 = vshra.s32 %v299, 16
  %v316 = vcvt.s32.f32 %v314
  %v317 = vcvt.s32.f32 %v315
  %318 = vmin.xlane.f32.xlu0 %v317
  %v319 = vpop.xlane.xlu0 %318
  %vm320 = vcmp.eq.f32.partialorder %v317, %v319
  %v321 = vsel %vm320, %v316, inf
  %322 = vmin.xlane.f32.xlu0 %v321
  %v323 = vpop.xlane.xlu0 %322
  %v324 = vcvt.f32.s32 %v323
  %v325 = vcvt.f32.s32 %v319
  %v326 = vshll.u32 %v325, 16
  %v327 = vadd.s32 %v326, %v324
  %v328 = vsub.s32 %v313, 8
  %v329 = vsub.s32 %v327, 8
  %v330 = vsub.f32 %v290, %v293
  %v331 = vsub.f32 %v291, %v295
  %v332 = vmul.f32 %v330, 1.442695
  %v333 = vpow.pop %v332
  %v334 = vmul.f32 %v331, 1.442695
  %v335 = vpow.pop %v334
  %336 = vadd.xlane.f32.xlu0 %v333
  %v337 = vpop.xlane.xlu0 %336
  %338 = vadd.xlane.f32.xlu0 %v335
  %v339 = vpop.xlane.xlu0 %338
  %vm340 = vcmp.eq.s32.totalorder %v286, 23
  %v341 = vsel %vm340, 0.0, %v333
  %v342 = vsel %vm340, 0.0, %v335
  %343 = vmax.xlane.f32.xlu0 %v341
  %v344 = vpop.xlane.xlu0 %343
  %345 = vmax.xlane.f32.xlu0 %v342
  %v346 = vpop.xlane.xlu0 %345
  %v347 = vrcp.pop %v337
  %v348 = vmul.f32 %v344, %v347
  %v349 = vrcp.pop %v339
  %v350 = vmul.f32 %v346, %v349
  %v351 = vxor.u32 %v160, 2147483648
  %v352 = vxor.u32 %v284, 2147483648
  %v353 = vmul.f32 %v351, 1.442695
  %v354 = vpow.pop %v353
  %v355 = vmul.f32 %v352, 1.442695
  %v356 = vpow.pop %v355
  %v357 = vadd.f32 %v354, 1.0
  %v358 = vadd.f32 %v356, 1.0
  %v359 = vrcp.pop %v357
  %v360 = vmul.f32 1.0, %v359
  %v361 = vrcp.pop %v358
  %v362 = vmul.f32 1.0, %v361
  %vm363 = vcmp.lt.s32.totalorder %v286, 4
  %vm364 = vcmp.eq.s32.totalorder %v286, 4
  %v365 = vcvt.s32.f32 %v328
  %v366 = vcvt.s32.f32 %v329
  %vm367 = vcmp.eq.s32.totalorder %v286, 5
  %v368 = vsel %vm367, %v348, 0.0
  %v369 = vsel %vm367, %v350, 0.0
  %v370 = vsel %vm364, %v365, %v368
  %v371 = vsel %vm364, %v366, %v369
  %v372 = vsel %vm363, %v360, %v370
  %v373 = vsel %vm363, %v362, %v371
  %374 = vst [vmem:[%s2] sm:$0xff] %v372
  %375 = vst [vmem:[%s2 + $0x8] sm:$0xff] %v373
  // Predicated region
  $region10: #{trace_wrapper_forward.1} parent=0 // pred_check
    _
  $region11: #{trace_wrapper_forward.1} parent=0 // pred_check_branch
    %377 = sbr.rel (0) target = $region13
  $region12: #{trace_wrapper_forward.1} parent=0 // pred_region
    _
  $region13: #{trace_wrapper_forward.1} parent=0 // pred_fallthru
    _
  // Predicated region
  $region14: #{trace_wrapper_forward.1} parent=0 // pred_check
    _
  $region15: #{trace_wrapper_forward.1} parent=0 // pred_check_branch
    %379 = sbr.rel (0) target = $region17
  $region16: #{trace_wrapper_forward.1} parent=0 // pred_region
    _
  $region17: #{trace_wrapper_forward.1} parent=0 // pred_fallthru
    _

</llo_original>
